<compile_context>
chip_gen: v6e
topology: v6e:2x2x1
jax: 0.10.0
libtpu: 0.0.40
codegen_flags: <defaults>
</compile_context>

<pallas_src>
import functools
import numpy as np

import jax
import jax.numpy as jnp
from jax.experimental import pallas as pl
from jax.experimental.pallas import tpu as pltpu


# ---------------------------------------------------------------------------
# Proposal generation — exact port of CMIN._generate_proposal (numpy part).
# ---------------------------------------------------------------------------
def generate_proposal(anchor_widths_cfg, num_segments):
    widths = np.array(anchor_widths_cfg)
    anchor_widths = np.broadcast_to(
        widths[None, :].astype(np.float32), (num_segments, len(widths))
    ).reshape(-1)                                        # (seg*A,)
    center = 7.5
    start = center - 0.5 * (widths - 1)
    end = center + 0.5 * (widths - 1)
    anchors = np.stack([start, end], -1)                 # (A, 2)
    num_anchors = anchors.shape[0]
    w = anchors[:, 1] - anchors[:, 0] + 1                # (A,)
    centers = np.arange(0, num_segments)
    start = np.expand_dims(centers, 1) - 0.5 * (np.expand_dims(w, 0) - 1)
    end = np.expand_dims(centers, 1) + 0.5 * (np.expand_dims(w, 0) - 1)
    proposals = np.stack([start, end], -1)               # (seg, A, 2)
    proposals_flatten = np.reshape(proposals, [-1, 2])   # (seg*A, 2)
    illegal = np.logical_or(
        proposals_flatten[:, 0] < 0, proposals_flatten[:, 1] >= num_segments
    )
    scores_mask = (1 - illegal).astype(np.float32)[None, :]     # (1, seg*A)
    proposals = proposals.reshape(-1, 2).astype(np.float32)     # (seg*A, 2)
    return (
        jnp.asarray(proposals),
        num_anchors,
        jnp.asarray(anchor_widths),
        jnp.asarray(scores_mask),
    )


def _round_up(x, m):
    return ((x + m - 1) // m) * m


def _pad2(x, rows, cols):
    r, c = x.shape
    return jnp.pad(x, ((0, rows - r), (0, cols - c)))


# ---------------------------------------------------------------------------
# Pallas kernel: fused multimodal fusion + prediction head + proposal decode.
# One grid step per M-tile of flattened (batch*segment) rows.  All operands
# are lane-padded to 128; the single output block is 128 lanes wide
# (cols [0,A) = masked iou scores, cols [A,3A) = decoded normalized boxes).
# ---------------------------------------------------------------------------
def _cmin_head_kernel(num_seg, num_anchors,
                      x_ref, qb_ref, wv_ref, wh_ref, prop_ref, mask_ref,
                      out_ref):
    # crossmodal fusion: h = relu(x @ W_v + (qpool @ W_q + b))   [bias hoisted]
    h = jnp.dot(x_ref[...], wv_ref[...], preferred_element_type=jnp.float32)
    h = jnp.maximum(h + qb_ref[...], 0.0)                       # (TM, Hp) f32

    # fused prediction head: one lane-dense matmul for [iou | box] columns
    z = jnp.dot(h.astype(jnp.bfloat16), wh_ref[...],
                preferred_element_type=jnp.float32)             # (TM, CP) f32

    # epilogue in f32 (v5e has no bf16 VPU/EUP path)
    iou_val = jax.nn.sigmoid(z) * mask_ref[...]                 # iou1d mask
    box_val = jnp.clip((z + prop_ref[...]) * (1.0 / float(num_seg)), 0.0, 1.0)

    col = jax.lax.broadcasted_iota(jnp.int32, z.shape, 1)
    out_ref[...] = jnp.where(col < num_anchors, iou_val, box_val)


def cmin_head_pallas(segfeats, qpool, params, proposals_flat, iou1dmask,
                     num_seg, *, tm=512):
    """segfeats: (B,S,F)  qpool: (B,1,W2V) -> iou (B,S,A), box (B,S,A,2)."""
    B, S, F = segfeats.shape
    H = params["W_v"].shape[1]
    A = params["W_iou"].shape[1]

    LANE = 128
    Fp = _round_up(F, LANE)
    Hp = _round_up(H, LANE)
    CP = _round_up(3 * A, LANE)                         # fused [iou | box] width
    M = B * S
    TM = min(tm, _round_up(M, 8))                       # M-tile (sublane-aligned)
    Mp = _round_up(M, TM)

    # ---- hoisted query branch: per-row additive bias (B,H) -> (M,H) --------
    qbias = qpool[:, 0, :] @ params["W_q"] + params["b_fuse"][None, :]  # (B,H)
    qbias = jnp.broadcast_to(qbias[:, None, :], (B, S, H)).reshape(M, H)
    qbias = _pad2(qbias, Mp, Hp)                                          # f32

    # ---- streamed activations + resident weights (bf16 MXU operands) -------
    x = _pad2(segfeats.reshape(M, F), Mp, Fp).astype(jnp.bfloat16)
    wv = _pad2(params["W_v"], Fp, Hp).astype(jnp.bfloat16)

    # fuse [W_iou | W_box] into one 128-lane head:
    #   cols [0,A)   -> iou logits
    #   cols [A,3A)  -> box offsets interleaved (anchor, start/end)
    w_head = jnp.zeros((Hp, CP), jnp.float32)
    w_head = w_head.at[:H, :A].set(params["W_iou"])
    w_head = w_head.at[:H, A:3 * A].set(params["W_box"])
    w_head = w_head.astype(jnp.bfloat16)

    # per-row proposals / iou1d mask laid out in the same 128-lane frame
    prop_rows = jnp.zeros((S, CP), jnp.float32)
    prop_rows = prop_rows.at[:, A:3 * A].set(proposals_flat.reshape(S, 2 * A))
    prop_rows = _pad2(jnp.tile(prop_rows, (B, 1)), Mp, CP)

    mask_rows = jnp.zeros((S, CP), jnp.float32)
    mask_rows = mask_rows.at[:, :A].set(iou1dmask.reshape(S, A))
    mask_rows = _pad2(jnp.tile(mask_rows, (B, 1)), Mp, CP)

    kernel = functools.partial(_cmin_head_kernel, num_seg, A)

    out = pl.pallas_call(
        kernel,
        out_shape=jax.ShapeDtypeStruct((Mp, CP), jnp.float32),
        grid_spec=pltpu.PrefetchScalarGridSpec(
            num_scalar_prefetch=0,
            grid=(Mp // TM,),
            in_specs=[
                pl.BlockSpec((TM, Fp), lambda m: (m, 0)),   # segfeats tile
                pl.BlockSpec((TM, Hp), lambda m: (m, 0)),   # query bias tile
                pl.BlockSpec((Fp, Hp), lambda m: (0, 0)),   # W_v (resident)
                pl.BlockSpec((Hp, CP), lambda m: (0, 0)),   # fused head (resident)
                pl.BlockSpec((TM, CP), lambda m: (m, 0)),   # proposals
                pl.BlockSpec((TM, CP), lambda m: (m, 0)),   # iou1d mask
            ],
            out_specs=pl.BlockSpec((TM, CP), lambda m: (m, 0)),
        ),
        compiler_params=pltpu.CompilerParams(
            dimension_semantics=("parallel",),
            vmem_limit_bytes=32 << 20),
    )(x, qbias, wv, w_head, prop_rows, mask_rows)

    out = out[:M]                                        # trim padded rows
    iou = out[:, :A].reshape(B, S, A)
    box = out[:, A:3 * A].reshape(B, S, A, 2)
    return iou, box


# ---------------------------------------------------------------------------
# Full CMIN forward (inference branch, normalized_predictor=False).
# ---------------------------------------------------------------------------
def cmin_forward(feats, segmasks, queries, adjmats, wordmasks,
                 params, proposals_flat, iou1dmask):
    num_seg = feats.shape[1]

    # --- encoder stand-ins (plain JAX glue) -------------------------------
    # TODO(synk): real CMIN encoders (multi-head self-attention video encoder,
    # syntactic GCN query encoder) are not in the reference; stand-ins below.
    segfeats = feats * segmasks[:, :, None]                       # masked feats
    q = jnp.einsum("blm,bmd->bld", adjmats, queries)              # graph-conv hop
    q = q * wordmasks[:, :, None]
    denom = jnp.maximum(wordmasks.sum(-1, keepdims=True), 1.0)
    qpool = (q.sum(axis=1) / denom)[:, None, :]                   # (B,1,w2v)

    # --- fused hot path in Pallas -----------------------------------------
    iou, box = cmin_head_pallas(segfeats, qpool, params,
                                proposals_flat, iou1dmask, num_seg)

    B, S, A = iou.shape
    iou_predict = iou.reshape(B, S * A)                 # (B, seg*num_anchors)
    loc_norm_predict = box.reshape(B, S * A, 2)         # (B, seg*num_anchors, 2)
    return loc_norm_predict, iou_predict


# --------------------------- pure-JAX reference ----------------------------
def cmin_forward_ref(feats, segmasks, queries, adjmats, wordmasks,
                     params, proposals_flat, iou1dmask):
    num_seg = feats.shape[1]
    segfeats = feats * segmasks[:, :, None]
    q = jnp.einsum("blm,bmd->bld", adjmats, queries) * wordmasks[:, :, None]
    denom = jnp.maximum(wordmasks.sum(-1, keepdims=True), 1.0)
    qpool = (q.sum(axis=1) / denom)[:, None, :]
    h = jnp.maximum(
        jnp.einsum("bsf,fh->bsh", segfeats, params["W_v"])
        + qpool @ params["W_q"] + params["b_fuse"], 0.0)
    B, S, _ = segfeats.shape
    A = params["W_iou"].shape[1]
    iou = jax.nn.sigmoid(jnp.einsum("bsh,ha->bsa", h, params["W_iou"]))
    iou = iou * iou1dmask.reshape(1, S, A)
    off = jnp.einsum("bsh,hk->bsk", h, params["W_box"]).reshape(B, S * A, 2)
    box = proposals_flat[None, :, :] + off
    loc = jnp.clip(box / num_seg, 0.0, 1.0)
    return loc, iou.reshape(B, S * A)


# ---------------------------------------------------------------------------
def make_params(key, feat_dim, w2v_dim, hidden, num_anchors):
    ks = jax.random.split(key, 5)
    scale = 0.05
    return {
        "W_v": scale * jax.random.normal(ks[0], (feat_dim, hidden), jnp.float32),
        "W_q": scale * jax.random.normal(ks[1], (w2v_dim, hidden), jnp.float32),
        "b_fuse": jnp.zeros((hidden,), jnp.float32),
        "W_iou": scale * jax.random.normal(ks[2], (hidden, num_anchors), jnp.float32),
        "W_box": scale * jax.random.normal(ks[3], (hidden, 2 * num_anchors), jnp.float32),
    }


if __name__ == "__main__":
    # Small config consistent with the module's forward.
    B, SEG, FEAT = 2, 16, 32
    MAXL, W2V = 8, 16
    HIDDEN = 32
    ANCHOR_WIDTHS = [4, 8]

    proposals, num_anchors, anchor_widths, iou1dmask = generate_proposal(
        ANCHOR_WIDTHS, SEG)

    key = jax.random.PRNGKey(0)
    k_feat, k_query, k_adj, k_param = jax.random.split(key, 4)

    feats = jax.random.normal(k_feat, (B, SEG, FEAT), jnp.float32)
    segmasks = jnp.ones((B, SEG), jnp.float32)
    queries = jax.random.normal(k_query, (B, MAXL, W2V), jnp.float32)
    adjmats = jax.random.uniform(k_adj, (B, MAXL, MAXL), jnp.float32)
    wordmasks = jnp.ones((B, MAXL), jnp.float32)

    params = make_params(k_param, FEAT, W2V, HIDDEN, num_anchors)

    fwd = jax.jit(functools.partial(
        cmin_forward,
        params=params, proposals_flat=proposals, iou1dmask=iou1dmask))

    loc_norm_predict, iou_predict = fwd(feats, segmasks, queries, adjmats, wordmasks)
    jax.block_until_ready((loc_norm_predict, iou_predict))

    # shape / range / reference checks
    assert loc_norm_predict.shape == (B, SEG * num_anchors, 2)
    assert iou_predict.shape == (B, SEG * num_anchors)
    assert bool(jnp.all(loc_norm_predict >= 0.0) & jnp.all(loc_norm_predict <= 1.0))

    loc_ref, iou_ref = cmin_forward_ref(
        feats, segmasks, queries, adjmats, wordmasks,
        params, proposals, iou1dmask)
    assert bool(jnp.allclose(iou_predict, iou_ref, atol=1e-2, rtol=1e-2))
    assert bool(jnp.allclose(loc_norm_predict, loc_ref, atol=1e-2, rtol=1e-2))

    print("KERNEL_OK")
</pallas_src>

<mosaic_0001>
module attributes {stable_mosaic.version = 11 : i64} {
  func.func @_cmin_head_kernel(%arg0: i32, %arg1: memref<32x128xbf16, #tpu.memory_space<vmem>>, %arg2: memref<32x128xf32, #tpu.memory_space<vmem>>, %arg3: memref<128x128xbf16, #tpu.memory_space<vmem>>, %arg4: memref<128x128xbf16, #tpu.memory_space<vmem>>, %arg5: memref<32x128xf32, #tpu.memory_space<vmem>>, %arg6: memref<32x128xf32, #tpu.memory_space<vmem>>, %arg7: memref<32x128xf32, #tpu.memory_space<vmem>>) attributes {dimension_semantics = [#tpu.dimension_semantics<parallel>], iteration_bounds = array<i64: 1>, scalar_prefetch = 0 : i64, scratch_operands = 0 : i64, tpu.core_type = #tpu.core_type<tc>, window_params = [{transform_indices = @transform_0, window_bounds = array<i64: 32, 128>}, {transform_indices = @transform_1, window_bounds = array<i64: 32, 128>}, {pipeline_mode = #tpu.pipeline_mode<synchronous>, transform_indices = @transform_2, window_bounds = array<i64: 128, 128>}, {pipeline_mode = #tpu.pipeline_mode<synchronous>, transform_indices = @transform_3, window_bounds = array<i64: 128, 128>}, {transform_indices = @transform_4, window_bounds = array<i64: 32, 128>}, {transform_indices = @transform_5, window_bounds = array<i64: 32, 128>}, {transform_indices = @transform_6, window_bounds = array<i64: 32, 128>}]} {
    %c0 = arith.constant 0 : index
    %c0_0 = arith.constant 0 : index
    %0 = vector.load %arg1[%c0, %c0_0] : memref<32x128xbf16, #tpu.memory_space<vmem>>, vector<32x128xbf16>
    %c0_1 = arith.constant 0 : index
    %c0_2 = arith.constant 0 : index
    %1 = vector.load %arg3[%c0_1, %c0_2] : memref<128x128xbf16, #tpu.memory_space<vmem>>, vector<128x128xbf16>
    %cst = arith.constant dense<0.000000e+00> : vector<32x128xf32>
    %2 = tpu.matmul %0, %1, %cst {dimension_numbers = #tpu.dot_dimension_numbers<[1], [0], [0], [1], [0, 0, 1, 1], [], []>} : vector<32x128xbf16>, vector<128x128xbf16>, vector<32x128xf32> -> vector<32x128xf32>
    %c0_3 = arith.constant 0 : index
    %c0_4 = arith.constant 0 : index
    %3 = vector.load %arg2[%c0_3, %c0_4] : memref<32x128xf32, #tpu.memory_space<vmem>>, vector<32x128xf32>
    %4 = arith.addf %2, %3 : vector<32x128xf32>
    %cst_5 = arith.constant 0.000000e+00 : f32
    %5 = vector.broadcast %cst_5 : f32 to vector<32x128xf32>
    %6 = arith.maximumf %4, %5 : vector<32x128xf32>
    %7 = arith.truncf %6 : vector<32x128xf32> to vector<32x128xbf16>
    %c0_6 = arith.constant 0 : index
    %c0_7 = arith.constant 0 : index
    %8 = vector.load %arg4[%c0_6, %c0_7] : memref<128x128xbf16, #tpu.memory_space<vmem>>, vector<128x128xbf16>
    %cst_8 = arith.constant dense<0.000000e+00> : vector<32x128xf32>
    %9 = tpu.matmul %7, %8, %cst_8 {dimension_numbers = #tpu.dot_dimension_numbers<[1], [0], [0], [1], [0, 0, 1, 1], [], []>} : vector<32x128xbf16>, vector<128x128xbf16>, vector<32x128xf32> -> vector<32x128xf32>
    %10 = arith.negf %9 : vector<32x128xf32>
    %11 = math.exp %10 : vector<32x128xf32>
    %cst_9 = arith.constant 1.000000e+00 : f32
    %12 = vector.broadcast %cst_9 : f32 to vector<32x128xf32>
    %13 = arith.addf %12, %11 : vector<32x128xf32>
    %14 = arith.divf %12, %13 : vector<32x128xf32>
    %c0_10 = arith.constant 0 : index
    %c0_11 = arith.constant 0 : index
    %15 = vector.load %arg6[%c0_10, %c0_11] : memref<32x128xf32, #tpu.memory_space<vmem>>, vector<32x128xf32>
    %16 = arith.mulf %14, %15 : vector<32x128xf32>
    %c0_12 = arith.constant 0 : index
    %c0_13 = arith.constant 0 : index
    %17 = vector.load %arg5[%c0_12, %c0_13] : memref<32x128xf32, #tpu.memory_space<vmem>>, vector<32x128xf32>
    %18 = arith.addf %9, %17 : vector<32x128xf32>
    %cst_14 = arith.constant 6.250000e-02 : f32
    %19 = vector.broadcast %cst_14 : f32 to vector<32x128xf32>
    %20 = arith.mulf %18, %19 : vector<32x128xf32>
    %cst_15 = arith.constant 0.000000e+00 : f32
    %cst_16 = arith.constant 1.000000e+00 : f32
    %21 = vector.broadcast %cst_15 : f32 to vector<32x128xf32>
    %22 = arith.maximumf %21, %20 : vector<32x128xf32>
    %23 = vector.broadcast %cst_16 : f32 to vector<32x128xf32>
    %24 = arith.minimumf %23, %22 : vector<32x128xf32>
    %25 = tpu.iota {dimensions = array<i32: 1>} : vector<32x128xi32>
    %c2_i32 = arith.constant 2 : i32
    %26 = vector.broadcast %c2_i32 : i32 to vector<32x128xi32>
    %27 = arith.cmpi slt, %25, %26 : vector<32x128xi32>
    %28 = arith.select %27, %16, %24 : vector<32x128xi1>, vector<32x128xf32>
    %c0_17 = arith.constant 0 : index
    %c0_18 = arith.constant 0 : index
    %29 = vector.load %arg7[%c0_17, %c0_18] : memref<32x128xf32, #tpu.memory_space<vmem>>, vector<32x128xf32>
    tpu.vector_store %arg7[%c0_17, %c0_18], %28 {strides = array<i32>} : memref<32x128xf32, #tpu.memory_space<vmem>>, vector<32x128xf32>,
    return
  }
  func.func @transform_0(%arg0: i32) -> (i32, i32) {
    %c0_i32 = arith.constant 0 : i32
    %c0_i32_0 = arith.constant 0 : i32
    return %arg0, %c0_i32 : i32, i32
  }
  func.func @transform_1(%arg0: i32) -> (i32, i32) {
    %c0_i32 = arith.constant 0 : i32
    %c0_i32_0 = arith.constant 0 : i32
    return %arg0, %c0_i32 : i32, i32
  }
  func.func @transform_2(%arg0: i32) -> (i32, i32) {
    %c0_i32 = arith.constant 0 : i32
    %c0_i32_0 = arith.constant 0 : i32
    %c0_i32_1 = arith.constant 0 : i32
    return %c0_i32, %c0_i32_0 : i32, i32
  }
  func.func @transform_3(%arg0: i32) -> (i32, i32) {
    %c0_i32 = arith.constant 0 : i32
    %c0_i32_0 = arith.constant 0 : i32
    %c0_i32_1 = arith.constant 0 : i32
    return %c0_i32, %c0_i32_0 : i32, i32
  }
  func.func @transform_4(%arg0: i32) -> (i32, i32) {
    %c0_i32 = arith.constant 0 : i32
    %c0_i32_0 = arith.constant 0 : i32
    return %arg0, %c0_i32 : i32, i32
  }
  func.func @transform_5(%arg0: i32) -> (i32, i32) {
    %c0_i32 = arith.constant 0 : i32
    %c0_i32_0 = arith.constant 0 : i32
    return %arg0, %c0_i32 : i32, i32
  }
  func.func @transform_6(%arg0: i32) -> (i32, i32) {
    %c0_i32 = arith.constant 0 : i32
    %c0_i32_0 = arith.constant 0 : i32
    return %arg0, %c0_i32 : i32, i32
  }
}

</mosaic_0001>

<llo_original>
// kernel: cmin_forward.1
$region0: #{cmin_forward.1}
  #allocation0 [shape = 'u32[]', space=smem, size = 0x4, offset = 0x4, fixed_abs, tag = 'smem constant byte address 0x4 - core index']
  #allocation1 [shape = 'u32[144,128]{1,0:T(1,128)}', space=vmem, size = 0x12000, scoped, tag = 'internal scratch']
  %s0 = inlined_call_operand.vmem [shape: bf16[32,128], index: 0, kind: input, shape index: {}]
  %s1 = inlined_call_operand.vmem [shape: f32[32,128], index: 1, kind: input, shape index: {}]
  %s2 = inlined_call_operand.vmem [shape: bf16[128,128], index: 2, kind: input, shape index: {}]
  %s3 = inlined_call_operand.vmem [shape: bf16[128,128], index: 3, kind: input, shape index: {}]
  %s4 = inlined_call_operand.vmem [shape: f32[32,128], index: 4, kind: input, shape index: {}]
  %s5 = inlined_call_operand.vmem [shape: f32[32,128], index: 5, kind: input, shape index: {}]
  %s6 = inlined_call_operand.vmem [shape: f32[32,128], index: 6, kind: output, shape index: {}]
  %s7 = sld [smem:[#allocation0]]
  $region34: #{cmin_forward.1} parent=0
    _
  %s9 = ssub.s32 1, %s7
  %s10 = scalar_select 0, %s9, %s7
  // Predicated region
  $region2: #{cmin_forward.1} parent=0 // pred_check
    _
  $region3: #{cmin_forward.1} parent=0 // pred_check_branch
    %12 = sbr.rel (0) target = $region5
  $region4: #{cmin_forward.1} parent=0 // pred_region
    _
  $region5: #{cmin_forward.1} parent=0 // pred_fallthru
    _
  // Predicated region
  $region6: #{cmin_forward.1} parent=0 // pred_check
    _
  $region7: #{cmin_forward.1} parent=0 // pred_check_branch
    %14 = sbr.rel (0) target = $region9
  $region8: #{cmin_forward.1} parent=0 // pred_region
    _
  $region9: #{cmin_forward.1} parent=0 // pred_fallthru
    _
  // Predicated region
  $region10: #{cmin_forward.1} parent=0 // pred_check
    _
  $region11: #{cmin_forward.1} parent=0 // pred_check_branch
    %16 = sbr.rel (0) target = $region13
  $region12: #{cmin_forward.1} parent=0 // pred_region
    _
  $region13: #{cmin_forward.1} parent=0 // pred_fallthru
    _
  // Predicated region
  $region14: #{cmin_forward.1} parent=0 // pred_check
    _
  $region15: #{cmin_forward.1} parent=0 // pred_check_branch
    %18 = sbr.rel (0) target = $region17
  $region16: #{cmin_forward.1} parent=0 // pred_region
    _
  $region17: #{cmin_forward.1} parent=0 // pred_fallthru
    _
  // Predicated region
  $region18: #{cmin_forward.1} parent=0 // pred_check
    _
  $region19: #{cmin_forward.1} parent=0 // pred_check_branch
    %20 = sbr.rel (0) target = $region21
  $region20: #{cmin_forward.1} parent=0 // pred_region
    _
  $region21: #{cmin_forward.1} parent=0 // pred_fallthru
    _
  // Predicated region
  $region22: #{cmin_forward.1} parent=0 // pred_check
    _
  $region23: #{cmin_forward.1} parent=0 // pred_check_branch
    %22 = sbr.rel (0) target = $region25
  $region24: #{cmin_forward.1} parent=0 // pred_region
    _
  $region25: #{cmin_forward.1} parent=0 // pred_fallthru
    _
  %v24 = vld [vmem:[%s0] sm:$0xf]
  %v25 = vld [vmem:[%s0 + $0x4] sm:$0xf]
  %v26 = vld [vmem:[%s0 + $0x8] sm:$0xf]
  %v27 = vld [vmem:[%s0 + $0xc] sm:$0xf]
  %v28 = vld [vmem:[%s2] sm:$0xf]
  %v29 = vld [vmem:[%s2 + $0x4] sm:$0xf]
  %v30 = vld [vmem:[%s2 + $0x8] sm:$0xf]
  %v31 = vld [vmem:[%s2 + $0xc] sm:$0xf]
  %v32 = vld [vmem:[%s2 + $0x10] sm:$0xf]
  %v33 = vld [vmem:[%s2 + $0x14] sm:$0xf]
  %v34 = vld [vmem:[%s2 + $0x18] sm:$0xf]
  %v35 = vld [vmem:[%s2 + $0x1c] sm:$0xf]
  %v36 = vld [vmem:[%s2 + $0x20] sm:$0xf]
  %v37 = vld [vmem:[%s2 + $0x24] sm:$0xf]
  %v38 = vld [vmem:[%s2 + $0x28] sm:$0xf]
  %v39 = vld [vmem:[%s2 + $0x2c] sm:$0xf]
  %v40 = vld [vmem:[%s2 + $0x30] sm:$0xf]
  %v41 = vld [vmem:[%s2 + $0x34] sm:$0xf]
  %v42 = vld [vmem:[%s2 + $0x38] sm:$0xf]
  %v43 = vld [vmem:[%s2 + $0x3c] sm:$0xf]
  %v44 = vld [vmem:[%s1] sm:$0xff]
  %v45 = vld [vmem:[%s1 + $0x8] sm:$0xff]
  %v46 = vld [vmem:[%s1 + $0x10] sm:$0xff]
  %v47 = vld [vmem:[%s1 + $0x18] sm:$0xff]
  %v52 = vunpack.c.l.b16 %v24
  %v53 = vunpack.c.l.b16 %v25
  %v54 = vunpack.c.l.b16 %v26
  %v55 = vunpack.c.l.b16 %v27
  %v56 = vpack.c.b16 %v53, %v52
  %v57 = vpack.c.b16 %v55, %v54
  %v76 = vunpack.c.l.b16 %v28
  %v77 = vunpack.c.l.b16 %v29
  %v78 = vunpack.c.l.b16 %v30
  %v79 = vunpack.c.l.b16 %v31
  %v80 = vunpack.c.l.b16 %v32
  %v81 = vunpack.c.l.b16 %v33
  %v82 = vunpack.c.l.b16 %v34
  %v83 = vunpack.c.l.b16 %v35
  %v84 = vunpack.c.l.b16 %v36
  %v85 = vunpack.c.l.b16 %v37
  %v86 = vunpack.c.l.b16 %v38
  %v87 = vunpack.c.l.b16 %v39
  %v88 = vunpack.c.l.b16 %v40
  %v89 = vunpack.c.l.b16 %v41
  %v90 = vunpack.c.l.b16 %v42
  %v91 = vunpack.c.l.b16 %v43
  %v92 = vpack.c.b16 %v77, %v76
  %v93 = vpack.c.b16 %v79, %v78
  %v94 = vpack.c.b16 %v81, %v80
  %v95 = vpack.c.b16 %v83, %v82
  %v96 = vpack.c.b16 %v85, %v84
  %v97 = vpack.c.b16 %v87, %v86
  %v98 = vpack.c.b16 %v89, %v88
  %v99 = vpack.c.b16 %v91, %v90
  %108 = vmatprep.subr.bf16.mxu0 0
  %109 = vmatpush1.bf16.msra.mxu0 %v99
  %110 = vmatprep.subr.bf16.mxu0 0
  %111 = vmatpush1.bf16.msra.mxu0 %v98
  %112 = vmatprep.subr.bf16.mxu0 0
  %113 = vmatpush1.bf16.msra.mxu0 %v97
  %114 = vmatprep.subr.bf16.mxu0 0
  %115 = vmatpush1.bf16.msra.mxu0 %v96
  %116 = vmatprep.subr.bf16.mxu0 0
  %117 = vmatpush1.bf16.msra.mxu0 %v95
  %118 = vmatprep.subr.bf16.mxu0 0
  %119 = vmatpush1.bf16.msra.mxu0 %v94
  %120 = vmatprep.subr.bf16.mxu0 0
  %121 = vmatpush1.bf16.msra.mxu0 %v93
  %122 = vmatprep.subr.bf16.mxu0 0
  %123 = vmatpush1.bf16.msra.mxu0 %v92
  %124 = vmatprep.subr.bf16.mxu0 0
  %125 = vmatpush2.bf16.msra.mxu0 0
  %126 = vmatprep.subr.bf16.mxu0 0
  %127 = vmatpush2.bf16.msra.mxu0 0
  %128 = vmatprep.subr.bf16.mxu0 0
  %129 = vmatpush2.bf16.msra.mxu0 0
  %130 = vmatprep.subr.bf16.mxu0 0
  %131 = vmatpush2.bf16.msra.mxu0 0
  %132 = vmatprep.subr.bf16.mxu0 0
  %133 = vmatpush2.bf16.msra.mxu0 0
  %134 = vmatprep.subr.bf16.mxu0 0
  %135 = vmatpush2.bf16.msra.mxu0 0
  %136 = vmatprep.subr.bf16.mxu0 0
  %137 = vmatpush2.bf16.msra.mxu0 0
  %138 = vmatprep.subr.bf16.mxu0 0
  %139 = vmatpush2.bf16.msra.mxu0 0
  %140 = vmatprep.mubr.bf16.mxu0 0
  %141 = vmatmul.mubr.bf16.gmra.mxu0 %v56
  %v142 = vpop.f32.mrf.mxu0
  %v143 = vadd.f32 %v44, %v142
  %v144 = vpop.f32.mrf.mxu0
  %v145 = vpop.f32.mrf.mxu0
  %v146 = vadd.f32 %v45, %v145
  %v147 = vpop.f32.mrf.mxu0
  %148 = vmatprep.mubr.bf16.mxu0 0
  %149 = vmatmul.mubr.bf16.gmra.mxu0 %v57
  %v150 = vpop.f32.mrf.mxu0
  %v151 = vadd.f32 %v46, %v150
  %v152 = vpop.f32.mrf.mxu0
  %v153 = vpop.f32.mrf.mxu0
  %v154 = vadd.f32 %v47, %v153
  %v155 = vpop.f32.mrf.mxu0
  %156 = vdwg.mxu0
  %v157 = vmax.f32 %v143, 0.0
  %v158 = vmax.f32 %v146, 0.0
  %v159 = vmax.f32 %v151, 0.0
  %v160 = vmax.f32 %v154, 0.0
  %v161 = vpack.c.bf16 %v158, %v157
  %v162 = vpack.c.bf16 %v160, %v159
  %v163 = vld [vmem:[%s3] sm:$0xf]
  %v164 = vld [vmem:[%s3 + $0x4] sm:$0xf]
  %v165 = vld [vmem:[%s3 + $0x8] sm:$0xf]
  %v166 = vld [vmem:[%s3 + $0xc] sm:$0xf]
  %v167 = vld [vmem:[%s3 + $0x10] sm:$0xf]
  %v168 = vld [vmem:[%s3 + $0x14] sm:$0xf]
  %v169 = vld [vmem:[%s3 + $0x18] sm:$0xf]
  %v170 = vld [vmem:[%s3 + $0x1c] sm:$0xf]
  %v171 = vld [vmem:[%s3 + $0x20] sm:$0xf]
  %v172 = vld [vmem:[%s3 + $0x24] sm:$0xf]
  %v173 = vld [vmem:[%s3 + $0x28] sm:$0xf]
  %v174 = vld [vmem:[%s3 + $0x2c] sm:$0xf]
  %v175 = vld [vmem:[%s3 + $0x30] sm:$0xf]
  %v176 = vld [vmem:[%s3 + $0x34] sm:$0xf]
  %v177 = vld [vmem:[%s3 + $0x38] sm:$0xf]
  %v178 = vld [vmem:[%s3 + $0x3c] sm:$0xf]
  %v195 = vunpack.c.l.b16 %v163
  %v196 = vunpack.c.l.b16 %v164
  %v197 = vunpack.c.l.b16 %v165
  %v198 = vunpack.c.l.b16 %v166
  %v199 = vunpack.c.l.b16 %v167
  %v200 = vunpack.c.l.b16 %v168
  %v201 = vunpack.c.l.b16 %v169
  %v202 = vunpack.c.l.b16 %v170
  %v203 = vunpack.c.l.b16 %v171
  %v204 = vunpack.c.l.b16 %v172
  %v205 = vunpack.c.l.b16 %v173
  %v206 = vunpack.c.l.b16 %v174
  %v207 = vunpack.c.l.b16 %v175
  %v208 = vunpack.c.l.b16 %v176
  %v209 = vunpack.c.l.b16 %v177
  %v210 = vunpack.c.l.b16 %v178
  %v211 = vpack.c.b16 %v196, %v195
  %v212 = vpack.c.b16 %v198, %v197
  %v213 = vpack.c.b16 %v200, %v199
  %v214 = vpack.c.b16 %v202, %v201
  %v215 = vpack.c.b16 %v204, %v203
  %v216 = vpack.c.b16 %v206, %v205
  %v217 = vpack.c.b16 %v208, %v207
  %v218 = vpack.c.b16 %v210, %v209
  %227 = vmatprep.subr.bf16.mxu0 0
  %228 = vmatpush1.bf16.msra.mxu0 %v218
  %229 = vmatprep.subr.bf16.mxu0 0
  %230 = vmatpush1.bf16.msra.mxu0 %v217
  %231 = vmatprep.subr.bf16.mxu0 0
  %232 = vmatpush1.bf16.msra.mxu0 %v216
  %233 = vmatprep.subr.bf16.mxu0 0
  %234 = vmatpush1.bf16.msra.mxu0 %v215
  %235 = vmatprep.subr.bf16.mxu0 0
  %236 = vmatpush1.bf16.msra.mxu0 %v214
  %237 = vmatprep.subr.bf16.mxu0 0
  %238 = vmatpush1.bf16.msra.mxu0 %v213
  %239 = vmatprep.subr.bf16.mxu0 0
  %240 = vmatpush1.bf16.msra.mxu0 %v212
  %241 = vmatprep.subr.bf16.mxu0 0
  %242 = vmatpush1.bf16.msra.mxu0 %v211
  %243 = vmatprep.subr.bf16.mxu0 0
  %244 = vmatpush2.bf16.msra.mxu0 0
  %245 = vmatprep.subr.bf16.mxu0 0
  %246 = vmatpush2.bf16.msra.mxu0 0
  %247 = vmatprep.subr.bf16.mxu0 0
  %248 = vmatpush2.bf16.msra.mxu0 0
  %249 = vmatprep.subr.bf16.mxu0 0
  %250 = vmatpush2.bf16.msra.mxu0 0
  %251 = vmatprep.subr.bf16.mxu0 0
  %252 = vmatpush2.bf16.msra.mxu0 0
  %253 = vmatprep.subr.bf16.mxu0 0
  %254 = vmatpush2.bf16.msra.mxu0 0
  %255 = vmatprep.subr.bf16.mxu0 0
  %256 = vmatpush2.bf16.msra.mxu0 0
  %257 = vmatprep.subr.bf16.mxu0 0
  %258 = vmatpush2.bf16.msra.mxu0 0
  %259 = vmatprep.mubr.bf16.mxu0 0
  %260 = vmatmul.mubr.bf16.gmra.mxu0 %v161
  %v261 = vpop.f32.mrf.mxu0
  %v262 = vadd.f32 0.0, %v261
  %v263 = vpop.f32.mrf.mxu0
  %v264 = vpop.f32.mrf.mxu0
  %v265 = vadd.f32 0.0, %v264
  %v266 = vpop.f32.mrf.mxu0
  %267 = vmatprep.mubr.bf16.mxu0 0
  %268 = vmatmul.mubr.bf16.gmra.mxu0 %v162
  %v269 = vpop.f32.mrf.mxu0
  %v270 = vadd.f32 0.0, %v269
  %v271 = vpop.f32.mrf.mxu0
  %v272 = vpop.f32.mrf.mxu0
  %v273 = vadd.f32 0.0, %v272
  %v274 = vpop.f32.mrf.mxu0
  %275 = vdwg.mxu0
  %v276 = vxor.u32 %v262, 2147483648
  %v277 = vxor.u32 %v265, 2147483648
  %v278 = vxor.u32 %v270, 2147483648
  %v279 = vxor.u32 %v273, 2147483648
  %v280 = vmul.f32 %v276, 1.442695
  %v281 = vpow.pop %v280
  %v282 = vmul.f32 %v277, 1.442695
  %v283 = vpow.pop %v282
  %v284 = vmul.f32 %v278, 1.442695
  %v285 = vpow.pop %v284
  %v286 = vmul.f32 %v279, 1.442695
  %v287 = vpow.pop %v286
  %v288 = vadd.f32 %v281, 1.0
  %v289 = vadd.f32 %v283, 1.0
  %v290 = vadd.f32 %v285, 1.0
  %v291 = vadd.f32 %v287, 1.0
  %v292 = vrcp.pop %v288
  %v293 = vmul.f32 1.0, %v292
  %v294 = vrcp.pop %v289
  %v295 = vmul.f32 1.0, %v294
  %v296 = vrcp.pop %v290
  %v297 = vmul.f32 1.0, %v296
  %v298 = vrcp.pop %v291
  %v299 = vmul.f32 1.0, %v298
  %v300 = vld [vmem:[%s5] sm:$0xff]
  %v301 = vld [vmem:[%s5 + $0x8] sm:$0xff]
  %v302 = vld [vmem:[%s5 + $0x10] sm:$0xff]
  %v303 = vld [vmem:[%s5 + $0x18] sm:$0xff]
  %v304 = vmul.f32 %v293, %v300
  %v305 = vmul.f32 %v295, %v301
  %v306 = vmul.f32 %v297, %v302
  %v307 = vmul.f32 %v299, %v303
  %v308 = vld [vmem:[%s4] sm:$0xff]
  %v309 = vld [vmem:[%s4 + $0x8] sm:$0xff]
  %v310 = vld [vmem:[%s4 + $0x10] sm:$0xff]
  %v311 = vld [vmem:[%s4 + $0x18] sm:$0xff]
  %v312 = vadd.f32 %v262, %v308
  %v313 = vadd.f32 %v265, %v309
  %v314 = vadd.f32 %v270, %v310
  %v315 = vadd.f32 %v273, %v311
  %v316 = vmul.f32 %v312, 0.0625
  %v317 = vmul.f32 %v313, 0.0625
  %v318 = vmul.f32 %v314, 0.0625
  %v319 = vmul.f32 %v315, 0.0625
  %v320 = vmax.f32 %v316, 0.0
  %v321 = vmax.f32 %v317, 0.0
  %v322 = vmax.f32 %v318, 0.0
  %v323 = vmax.f32 %v319, 0.0
  %v324 = vmin.f32 %v320, 1.0
  %v325 = vmin.f32 %v321, 1.0
  %v326 = vmin.f32 %v322, 1.0
  %v327 = vmin.f32 %v323, 1.0
  %v328 = vlaneseq
  %v329 = vand.u32 %v328, 127
  %vm330 = vcmp.lt.s32.totalorder %v329, 2
  %v331 = vsel %vm330, %v304, %v324
  %v332 = vsel %vm330, %v305, %v325
  %v333 = vsel %vm330, %v306, %v326
  %v334 = vsel %vm330, %v307, %v327
  %335 = vst [vmem:[%s6] sm:$0xff] %v331
  %336 = vst [vmem:[%s6 + $0x8] sm:$0xff] %v332
  %337 = vst [vmem:[%s6 + $0x10] sm:$0xff] %v333
  %338 = vst [vmem:[%s6 + $0x18] sm:$0xff] %v334
  // Predicated region
  $region26: #{cmin_forward.1} parent=0 // pred_check
    _
  $region27: #{cmin_forward.1} parent=0 // pred_check_branch
    %340 = sbr.rel (0) target = $region29
  $region28: #{cmin_forward.1} parent=0 // pred_region
    _
  $region29: #{cmin_forward.1} parent=0 // pred_fallthru
    _
  // Predicated region
  $region30: #{cmin_forward.1} parent=0 // pred_check
    _
  $region31: #{cmin_forward.1} parent=0 // pred_check_branch
    %342 = sbr.rel (0) target = $region33
  $region32: #{cmin_forward.1} parent=0 // pred_region
    _
  $region33: #{cmin_forward.1} parent=0 // pred_fallthru
    _

</llo_original>
